<compile_context>
chip_gen: v7x
topology: tpu7x:2x2x1
jax: 0.10.0
libtpu: 0.0.40
codegen_flags: <defaults>
</compile_context>

<pallas_src>
import functools

import jax
import jax.numpy as jnp
from jax.experimental import pallas as pl
from jax.experimental.pallas import tpu as pltpu


def _blend_kernel(img_ref, trig_ref, out_ref, *, alpha):
    # img_ref : (TB, CHW) uint8 block of flattened images
    # trig_ref: (1,  CHW) uint8 flattened trigger (same block every grid step)
    img = img_ref[...].astype(jnp.float32)
    trig = trig_ref[...].astype(jnp.float32)  # broadcasts over the TB rows
    # PIL.Image.blend: im1 + alpha * (im2 - im1), clipped to uint8 range.
    blended = img + jnp.float32(alpha) * (trig - img)
    blended = jnp.clip(blended, 0.0, 255.0)
    # float -> uint8 cast truncates toward zero (== floor for non-negative),
    # matching PIL's C implementation.
    out_ref[...] = blended.astype(out_ref.dtype)


def whole_blended_trigger(img_u8, trigger_u8, alpha, *, target_block_bytes=2 << 20):
    """img_u8: (N, C, H, W) uint8;  trigger_u8: (C, H, W) uint8;  alpha: float."""
    N, C, H, W = img_u8.shape
    assert trigger_u8.shape == (C, H, W)
    CHW = C * H * W

    # Lane-dense 2D views (metadata-only reshapes; data stays uint8).
    img2d = img_u8.reshape(N, CHW)
    trig2d = trigger_u8.reshape(1, CHW)

    # Rows per block: aim for ~target_block_bytes of uint8 per input block
    # (well under VMEM limits even with double buffering on v7x), rounded to a
    # multiple of 32 (uint8 sublane packing) when the batch doesn't fit whole.
    tb = max(1, target_block_bytes // CHW)
    if tb < N and tb >= 32:
        tb = (tb // 32) * 32
    tb = min(tb, N)

    grid = (pl.cdiv(N, tb),)

    kernel = functools.partial(_blend_kernel, alpha=float(alpha))

    out2d = pl.pallas_call(
        kernel,
        out_shape=jax.ShapeDtypeStruct((N, CHW), jnp.uint8),
        grid_spec=pltpu.PrefetchScalarGridSpec(
            num_scalar_prefetch=0,
            grid=grid,
            in_specs=[
                pl.BlockSpec((tb, CHW), lambda i: (i, 0)),
                pl.BlockSpec((1, CHW), lambda i: (0, 0)),
            ],
            out_specs=pl.BlockSpec((tb, CHW), lambda i: (i, 0)),
        ),
        compiler_params=pltpu.CompilerParams(
            dimension_semantics=("parallel",),
        ),
    )(img2d, trig2d)

    return out2d.reshape(N, C, H, W)


if __name__ == "__main__":
    key = jax.random.PRNGKey(0)
    k_img, k_trig = jax.random.split(key)

    N, C, H, W = 2, 3, 16, 16          # input_size = 16, RGB
    alpha = 0.2

    img = jax.random.randint(k_img, (N, C, H, W), 0, 256, dtype=jnp.int32).astype(jnp.uint8)
    # Deterministic synthetic "trigger image" (stands in for the resized PNG).
    trigger = jax.random.randint(k_trig, (C, H, W), 0, 256, dtype=jnp.int32).astype(jnp.uint8)

    out = whole_blended_trigger(img, trigger, alpha)
    out = jax.block_until_ready(out)

    # Pure-JAX reference of the same blend semantics for a sanity check.
    ref = jnp.floor(
        jnp.clip(
            img.astype(jnp.float32)
            + alpha * (trigger[None].astype(jnp.float32) - img.astype(jnp.float32)),
            0.0,
            255.0,
        )
    ).astype(jnp.uint8)
    assert out.shape == (N, C, H, W) and out.dtype == jnp.uint8
    assert bool(jnp.all(out == ref))

    print("KERNEL_OK")
</pallas_src>

<mosaic_0001>
module attributes {stable_mosaic.version = 11 : i64} {
  func.func @_blend_kernel(%arg0: i32, %arg1: memref<2x768xi8, #tpu.memory_space<vmem>>, %arg2: memref<1x768xi8, #tpu.memory_space<vmem>>, %arg3: memref<2x768xi8, #tpu.memory_space<vmem>>) attributes {dimension_semantics = [#tpu.dimension_semantics<parallel>], iteration_bounds = array<i64: 1>, scalar_prefetch = 0 : i64, scratch_operands = 0 : i64, tpu.core_type = #tpu.core_type<tc>, window_params = [{transform_indices = @transform_0, window_bounds = array<i64: 2, 768>}, {pipeline_mode = #tpu.pipeline_mode<synchronous>, transform_indices = @transform_1, window_bounds = array<i64: 1, 768>}, {transform_indices = @transform_2, window_bounds = array<i64: 2, 768>}]} {
    %c0 = arith.constant 0 : index
    %c0_0 = arith.constant 0 : index
    %0 = vector.load %arg1[%c0, %c0_0] : memref<2x768xi8, #tpu.memory_space<vmem>>, vector<2x768xi8>
    %1 = arith.uitofp %0 : vector<2x768xi8> to vector<2x768xf32>
    %c0_1 = arith.constant 0 : index
    %c0_2 = arith.constant 0 : index
    %2 = vector.load %arg2[%c0_1, %c0_2] : memref<1x768xi8, #tpu.memory_space<vmem>>, vector<1x768xi8>
    %3 = arith.uitofp %2 : vector<1x768xi8> to vector<1x768xf32>
    %4 = vector.broadcast %3 : vector<1x768xf32> to vector<2x768xf32>
    %5 = arith.subf %4, %1 : vector<2x768xf32>
    %cst = arith.constant 2.000000e-01 : f32
    %6 = vector.broadcast %cst : f32 to vector<2x768xf32>
    %7 = arith.mulf %6, %5 : vector<2x768xf32>
    %8 = arith.addf %1, %7 : vector<2x768xf32>
    %cst_3 = arith.constant 0.000000e+00 : f32
    %cst_4 = arith.constant 2.550000e+02 : f32
    %9 = vector.broadcast %cst_3 : f32 to vector<2x768xf32>
    %10 = arith.maximumf %9, %8 : vector<2x768xf32>
    %11 = vector.broadcast %cst_4 : f32 to vector<2x768xf32>
    %12 = arith.minimumf %11, %10 : vector<2x768xf32>
    %13 = arith.fptoui %12 : vector<2x768xf32> to vector<2x768xi8>
    %c0_5 = arith.constant 0 : index
    %c0_6 = arith.constant 0 : index
    %14 = vector.load %arg3[%c0_5, %c0_6] : memref<2x768xi8, #tpu.memory_space<vmem>>, vector<2x768xi8>
    tpu.vector_store %arg3[%c0_5, %c0_6], %13 {strides = array<i32>} : memref<2x768xi8, #tpu.memory_space<vmem>>, vector<2x768xi8>,
    return
  }
  func.func @transform_0(%arg0: i32) -> (i32, i32) {
    %c0_i32 = arith.constant 0 : i32
    %c0_i32_0 = arith.constant 0 : i32
    return %arg0, %c0_i32 : i32, i32
  }
  func.func @transform_1(%arg0: i32) -> (i32, i32) {
    %c0_i32 = arith.constant 0 : i32
    %c0_i32_0 = arith.constant 0 : i32
    %c0_i32_1 = arith.constant 0 : i32
    return %c0_i32, %c0_i32_0 : i32, i32
  }
  func.func @transform_2(%arg0: i32) -> (i32, i32) {
    %c0_i32 = arith.constant 0 : i32
    %c0_i32_0 = arith.constant 0 : i32
    return %arg0, %c0_i32 : i32, i32
  }
}

</mosaic_0001>

<llo_original>
// kernel: tpu_custom_call.1
$region0: #{tpu_custom_call.1}
  #allocation0 [shape = 'u32[]', space=smem, size = 0x4, offset = 0x4, fixed_abs, tag = 'smem constant byte address 0x4 - core index']
  #allocation1 [shape = 'u32[144,128]{1,0:T(1,128)}', space=vmem, size = 0x12000, scoped, tag = 'internal scratch']
  %s0 = inlined_call_operand.hbm [shape: u8[2,768], index: 0, kind: input, shape index: {}]
  %s1 = inlined_call_operand.hbm [shape: u8[1,768], index: 1, kind: input, shape index: {}]
  %s2 = inlined_call_operand.hbm [shape: u8[2,768], index: 2, kind: output, shape index: {}]
  %s3 = sld [smem:[#allocation0]]
  $region26: #{tpu_custom_call.1} parent=0
    _
  %s5 = ssub.s32 1, %s3
  %s6 = scalar_select 0, %s5, %s3
  $region1: #{tpu_custom_call.1} parent=0
    #allocation2 [shape = 'u8[3072]{0}', space=vmem, size = 0xc00, scoped, tag = 'input window, operand 0, single buffered']
    #allocation3 [shape = 's32[1]{0}', space=sflag, size = 0x4, scoped, tag = 'scoped memory for tpu_custom_call.1']
    #allocation4 [shape = 's32[1]{0}', space=sflag, size = 0x4, scoped, tag = 'scoped memory for tpu_custom_call.1']
    #allocation5 [shape = 'u8[3072]{0}', space=vmem, size = 0xc00, scoped, tag = 'input window, operand 1, single buffered']
    #allocation6 [shape = 's32[1]{0}', space=sflag, size = 0x4, scoped, tag = 'scoped memory for tpu_custom_call.1']
    #allocation7 [shape = 'u8[3072]{0}', space=vmem, size = 0xc00, scoped, tag = 'output window, operand 0, single buffered']
    %7 = vsyncpa [#allocation3], 0
    %8 = vsyncpa [#allocation6], 0
    %9 = vsyncpa [#allocation4], 0
    // Predicated region
    $region2: #{tpu_custom_call.1} parent=1 // pred_check
      _
    $region3: #{tpu_custom_call.1} parent=1 // pred_check_branch
      %11 = sbr.rel (0) target = $region5
    $region4: #{tpu_custom_call.1} parent=1 // pred_region
      %s13 = ssub.s32 96, 96
      %14 = vsyncadd [#allocation3], %s13
      %s16 = sshll.u32 [#allocation2], 4
      %s17 = int_to_ptr.vmem [resolvable:$true] %s16
      %19 = dma.hbm_to_vmem [thread:$0]  %s0, 96, %s17, [#allocation3]
    $region5: #{tpu_custom_call.1} parent=1 // pred_fallthru
      _
    // Predicated region
    $region6: #{tpu_custom_call.1} parent=1 // pred_check
      _
    $region7: #{tpu_custom_call.1} parent=1 // pred_check_branch
      %21 = sbr.rel (0) target = $region9
    $region8: #{tpu_custom_call.1} parent=1 // pred_region
      %s23 = ssub.s32 96, 96
      %24 = vsyncadd [#allocation6], %s23
      %s26 = sshll.u32 [#allocation5], 4
      %s27 = int_to_ptr.vmem [resolvable:$true] %s26
      %29 = dma.hbm_to_vmem [thread:$0]  %s1, 96, %s27, [#allocation6]
    $region9: #{tpu_custom_call.1} parent=1 // pred_fallthru
      _
    // Predicated region
    $region10: #{tpu_custom_call.1} parent=1 // pred_check
      _
    $region11: #{tpu_custom_call.1} parent=1 // pred_check_branch
      %31 = sbr.rel (0) target = $region13
    $region12: #{tpu_custom_call.1} parent=1 // pred_region
      %32 = dma.done [#allocation3], 96
    $region13: #{tpu_custom_call.1} parent=1 // pred_fallthru
      _
    // Predicated region
    $region14: #{tpu_custom_call.1} parent=1 // pred_check
      _
    $region15: #{tpu_custom_call.1} parent=1 // pred_check_branch
      %34 = sbr.rel (0) target = $region17
    $region16: #{tpu_custom_call.1} parent=1 // pred_region
      %35 = dma.done [#allocation6], 96
    $region17: #{tpu_custom_call.1} parent=1 // pred_fallthru
      _
    %v36 = vld [vmem:[#allocation2] sm:$0x3f]
    %v37 = vunpack.c.0.s8 %v36
    %v38 = vunpack.c.1.s8 %v36
    %v39 = vunpack.c.2.s8 %v36
    %v40 = vand.u32 %v37, 255
    %v41 = vand.u32 %v38, 255
    %v42 = vand.u32 %v39, 255
    %v43 = vcvt.s32.f32 %v40
    %v44 = vcvt.s32.f32 %v41
    %v45 = vcvt.s32.f32 %v42
    %v46 = vld [vmem:[#allocation5] sm:$0x3f]
    %v47 = vunpack.c.0.s8 %v46
    %v48 = vunpack.c.1.s8 %v46
    %v49 = vunpack.c.2.s8 %v46
    %v50 = vand.u32 %v47, 255
    %v51 = vand.u32 %v48, 255
    %v52 = vand.u32 %v49, 255
    %v53 = vcvt.s32.f32 %v50
    %v54 = vcvt.s32.f32 %v51
    %v55 = vcvt.s32.f32 %v52
    %v59 = vlaneseq
    %v60 = vshrl.u32 %v59, 7
    %v61 = vsub.s32 0, %v60
    %v62 = vrot.slane %v53, %v61
    %v63 = vlaneseq
    %v64 = vshrl.u32 %v63, 7
    %v65 = vsub.s32 4, %v64
    %v66 = vrot.slane %v53, %v65
    %v67 = vlaneseq
    %v68 = vshrl.u32 %v67, 7
    %v69 = vsub.s32 0, %v68
    %v70 = vrot.slane %v54, %v69
    %v71 = vlaneseq
    %v72 = vshrl.u32 %v71, 7
    %v73 = vsub.s32 4, %v72
    %v74 = vrot.slane %v54, %v73
    %v75 = vlaneseq
    %v76 = vshrl.u32 %v75, 7
    %v77 = vsub.s32 0, %v76
    %v78 = vrot.slane %v55, %v77
    %v79 = vlaneseq
    %v80 = vshrl.u32 %v79, 7
    %v81 = vsub.s32 4, %v80
    %v82 = vrot.slane %v55, %v81
    %v89 = vlaneseq
    %v90 = vshrl.u32 %v89, 7
    %v91 = vsub.s32 0, %v90
    %v92 = vrot.slane %v62, %v91
    %v93 = vlaneseq
    %v94 = vshrl.u32 %v93, 7
    %v95 = vsub.s32 0, %v94
    %v96 = vrot.slane %v66, %v95
    %v97 = vlaneseq
    %v98 = vshrl.u32 %v97, 7
    %v99 = vsub.s32 0, %v98
    %v100 = vrot.slane %v70, %v99
    %v101 = vlaneseq
    %v102 = vshrl.u32 %v101, 7
    %v103 = vsub.s32 0, %v102
    %v104 = vrot.slane %v74, %v103
    %v105 = vlaneseq
    %v106 = vshrl.u32 %v105, 7
    %v107 = vsub.s32 0, %v106
    %v108 = vrot.slane %v78, %v107
    %v109 = vlaneseq
    %v110 = vshrl.u32 %v109, 7
    %v111 = vsub.s32 0, %v110
    %v112 = vrot.slane %v82, %v111
    %v116 = vcombine.high %v43, %v43
    %v117 = vcombine.high %v44, %v44
    %v118 = vcombine.high %v45, %v45
    %v122 = vsub.f32 %v92, %v43
    %v123 = vsub.f32 %v96, %v116
    %v124 = vsub.f32 %v100, %v44
    %v125 = vsub.f32 %v104, %v117
    %v126 = vsub.f32 %v108, %v45
    %v127 = vsub.f32 %v112, %v118
    %v128 = vmul.f32 %v122, 0.2
    %v129 = vmul.f32 %v123, 0.2
    %v130 = vmul.f32 %v124, 0.2
    %v131 = vmul.f32 %v125, 0.2
    %v132 = vmul.f32 %v126, 0.2
    %v133 = vmul.f32 %v127, 0.2
    %v140 = vcombine.low %v128, %v129
    %v141 = vcombine.low %v130, %v131
    %v142 = vcombine.low %v132, %v133
    %v146 = vadd.f32 %v43, %v140
    %v147 = vadd.f32 %v44, %v141
    %v148 = vadd.f32 %v45, %v142
    %v149 = vmax.f32 %v146, 0.0
    %v150 = vmax.f32 %v147, 0.0
    %v151 = vmax.f32 %v148, 0.0
    %v152 = vmin.f32 %v149, 255.0
    %v153 = vmin.f32 %v150, 255.0
    %v154 = vmin.f32 %v151, 255.0
    %v158 = vcombine.high %v152, %v152
    %v159 = vcombine.high %v153, %v153
    %v160 = vcombine.high %v154, %v154
    %v164 = vtrunc.f32 %v152
    %v165 = vtrunc.f32 %v158
    %v166 = vtrunc.f32 %v153
    %v167 = vtrunc.f32 %v159
    %v168 = vtrunc.f32 %v154
    %v169 = vtrunc.f32 %v160
    %v170 = vpack.c.f32.eXmY %v164, %v164, 56
    %v174 = vpack.c.b8 %v170, %v170
    %v176 = vpack.c.f32.eXmY %v165, %v165, 56
    %v180 = vpack.c.b8 %v176, %v176
    %v182 = vpack.c.f32.eXmY %v166, %v166, 56
    %v186 = vpack.c.b8 %v182, %v182
    %v188 = vpack.c.f32.eXmY %v167, %v167, 56
    %v192 = vpack.c.b8 %v188, %v188
    %v194 = vpack.c.f32.eXmY %v168, %v168, 56
    %v198 = vpack.c.b8 %v194, %v194
    %v200 = vpack.c.f32.eXmY %v169, %v169, 56
    %v204 = vpack.c.b8 %v200, %v200
    %v206 = vcombine.low %v174, %v180
    %v207 = vcombine.low %v186, %v192
    %v208 = vcombine.low %v198, %v204
    %v210 = vunpack.c.l.s4 1966171168
    %v211 = vunpack.c.0.s8 %v210
    %v212 = vlaneseq
    %v213 = vshrl.u32 %v212, 7
    %v214 = vsub.s32 %v211, %v213
    %v215 = vrot.slane %v206, %v214
    %v217 = vunpack.c.l.s4 1966171168
    %v218 = vunpack.c.0.s8 %v217
    %v219 = vlaneseq
    %v220 = vshrl.u32 %v219, 7
    %v221 = vsub.s32 %v218, %v220
    %v222 = vrot.slane %v207, %v221
    %v224 = vunpack.c.l.s4 1966171168
    %v225 = vunpack.c.0.s8 %v224
    %v226 = vlaneseq
    %v227 = vshrl.u32 %v226, 7
    %v228 = vsub.s32 %v225, %v227
    %v229 = vrot.slane %v208, %v228
    %v230 = vcombine.low %v215, %v222
    %v232 = vunpack.c.l.s4 1966171168
    %v233 = vunpack.c.0.s8 %v232
    %v234 = vlaneseq
    %v235 = vshrl.u32 %v234, 7
    %v236 = vsub.s32 %v233, %v235
    %v237 = vrot.slane %v230, %v236
    %v239 = vunpack.c.l.s4 1966171168
    %v240 = vunpack.c.0.s8 %v239
    %v241 = vlaneseq
    %v242 = vshrl.u32 %v241, 7
    %v243 = vsub.s32 %v240, %v242
    %v244 = vrot.slane %v229, %v243
    %v245 = vcombine.low %v237, %v244
    %vm246 = vcmask 1040384
    %vm247 = vsmask.f32 256
    %vm248 = vmand %vm246, %vm247
    %vm249 = vcmask 1041409
    %vm250 = vsmask.f32 1280
    %vm251 = vmand %vm249, %vm250
    %vm252 = vmor %vm251, %vm248
    %vm253 = vcmask 1042434
    %vm254 = vsmask.f32 2304
    %vm255 = vmand %vm253, %vm254
    %vm256 = vmor %vm255, %vm252
    %vm257 = vcmask 1043459
    %vm258 = vsmask.f32 3328
    %vm259 = vmand %vm257, %vm258
    %vm260 = vmor %vm259, %vm256
    %vm261 = vcmask 1044484
    %vm262 = vsmask.f32 4352
    %vm263 = vmand %vm261, %vm262
    %vm264 = vmor %vm263, %vm260
    %vm265 = vcmask 1045509
    %vm266 = vsmask.f32 5376
    %vm267 = vmand %vm265, %vm266
    %vm268 = vmor %vm267, %vm264
    %v269 = vld [vmem:[#allocation7] sm:$0x3f]
    %v270 = vsel %vm268, %v245, %v269
    %271 = vst [vmem:[#allocation7] sm:$0x3f] %v270
    // Predicated region
    $region18: #{tpu_custom_call.1} parent=1 // pred_check
      _
    $region19: #{tpu_custom_call.1} parent=1 // pred_check_branch
      %273 = sbr.rel (0) target = $region21
    $region20: #{tpu_custom_call.1} parent=1 // pred_region
      %s275 = ssub.s32 96, 96
      %276 = vsyncadd [#allocation4], %s275
      %s278 = sshll.u32 [#allocation7], 4
      %s279 = int_to_ptr.vmem [resolvable:$true] %s278
      %281 = dma.vmem_to_hbm [thread:$0]  %s279, 96, %s2, [#allocation4]
    $region21: #{tpu_custom_call.1} parent=1 // pred_fallthru
      _
    // Predicated region
    $region22: #{tpu_custom_call.1} parent=1 // pred_check
      _
    $region23: #{tpu_custom_call.1} parent=1 // pred_check_branch
      %283 = sbr.rel (0) target = $region25
    $region24: #{tpu_custom_call.1} parent=1 // pred_region
      %284 = dma.done [#allocation4], 96
    $region25: #{tpu_custom_call.1} parent=1 // pred_fallthru
      _
    %285 = vsyncpa [#allocation3], 1
    %286 = vsyncpa [#allocation6], 1
    %287 = vsyncpa [#allocation4], 1

</llo_original>
